<compile_context>
chip_gen: v5e
topology: v5e:2x2
jax: 0.10.0
libtpu: 0.0.40
codegen_flags: <defaults>
</compile_context>

<pallas_src>
import inspect
import numpy as np
import jax
import jax.numpy as jnp
from jax.experimental import pallas as pl
from jax.experimental.pallas import tpu as pltpu

WINDOW_SIZE = 11
SIGMA = 1.5
PAD = WINDOW_SIZE // 2
C1 = 0.01 ** 2
C2 = 0.03 ** 2
_MXU_TILE = 256      # native MXU tile width on v6e/v7x (would use 128 on v5e)


def _gaussian_1d(window_size=WINDOW_SIZE, sigma=SIGMA):
    # Deterministic re-implementation of gaussian() (sigma = 1.5).
    xs = np.arange(window_size)
    g = np.exp(-((xs - window_size // 2) ** 2) / (2.0 * sigma ** 2)).astype(np.float64)
    return (g / g.sum()).astype(np.float32)


_G1D = _gaussian_1d()
_W2D = np.outer(_G1D, _G1D).astype(np.float32)   # for the pure-JAX reference


def _toeplitz(n):
    """Banded symmetric Toeplitz T (n, n): T @ x == zero-padded 1-D Gaussian
    conv of x along rows; x @ T == the same conv along columns."""
    idx = np.arange(n)
    d = idx[None, :] - idx[:, None]
    t = np.where(np.abs(d) <= PAD, _G1D[np.clip(d + PAD, 0, WINDOW_SIZE - 1)], 0.0)
    return t.astype(np.float32)


def _block_diag(block, reps):
    n = block.shape[0]
    out = np.zeros((reps * n, reps * n), np.float32)
    for r in range(reps):
        out[r * n:(r + 1) * n, r * n:(r + 1) * n] = block
    return out


def _plan(nc, h, w):
    """Pick (lane_pack, planes_per_step G).

    lane_pack=False: natural (NC*H, W) layout (free reshape, no transpose
      passes), one plane per grid step, column Toeplitz is a plain (W, W)
      matrix.  Used whenever W is already a multiple of 128 (lane dense).
    lane_pack=True: planes packed along lanes so G*W is a multiple of 128 and
      <= the MXU tile (bounds the block-diagonal constant and its zero waste),
      at the cost of a transpose per input in the wrapper.  Used for W < 128.
    """
    natural_ok = (h % 8 == 0) or (nc == 1)   # (H, W) block legality in (NC*H, W)
    if w % 128 == 0 and natural_ok:
        return False, 1
    cands = [g for g in range(1, nc + 1)
             if nc % g == 0 and (g * w) % 128 == 0 and g * w <= _MXU_TILE]
    if cands:
        multi_step = [g for g in cands if nc // g >= 2]   # prefer NB >= 2 (megacore)
        return True, (max(multi_step) if multi_step else max(cands))
    if natural_ok:
        return False, 1          # lane-sparse but small & bounded constants
    # Last resort: one lane-packed block spanning all planes.
    # TODO(synk): needs H/W-band tiling instead if NC*W is large.
    return True, nc


def _recip(x):
    # EUP approximate reciprocal + one Newton refinement (~1e-7 rel accuracy).
    r = pl.reciprocal(x, approx=True)
    return r * (2.0 - x * r)


def _ssim_sum_kernel(i1_ref, i2_ref, m_ref, th_ref, twb_ref, out_ref):
    """One grid step = one (H, GW) plane-group slab (GW = G*W lanes).

    All six depthwise Gaussian blurs are done with two MXU matmuls:
      row pass   : T_H       @ (H, 6*GW)   (fields concatenated along lanes)
      column pass: (6*H, GW) @ T_Wblk      (fields re-stacked along sublanes)
    Emits the per-lane column sums of the SSIM map (broadcast to 8 sublanes).
    """
    h, gw = i1_ref.shape
    i1 = i1_ref[...].astype(jnp.float32)
    i2 = i2_ref[...].astype(jnp.float32)
    m = m_ref[...].astype(jnp.float32)
    th = th_ref[...]                      # (H, H)   row-direction Toeplitz
    twb = twb_ref[...]                    # (GW, GW) column-direction Toeplitz

    # --- six blurs in two matmuls -------------------------------------------
    fields = jnp.concatenate([m, i1, i2, i1 * i1, i2 * i2, i1 * i2], axis=1)   # (H, 6GW)
    r = jnp.dot(th, fields, preferred_element_type=jnp.float32)                # row blur
    r6 = jnp.concatenate([r[:, k * gw:(k + 1) * gw] for k in range(6)], axis=0)  # (6H, GW)
    c = jnp.dot(r6, twb, preferred_element_type=jnp.float32)                   # column blur

    cm = c[0 * h:1 * h, :]
    c1 = c[1 * h:2 * h, :]
    c2 = c[2 * h:3 * h, :]
    c11 = c[3 * h:4 * h, :]
    c22 = c[4 * h:5 * h, :]
    c12 = c[5 * h:6 * h, :]

    # --- fused SSIM map (few live (H, GW) slabs) -----------------------------
    inv_cm = _recip(cm + 1e-10)
    mu1 = c1 * inv_cm
    mu2 = c2 * inv_cm
    mu1_mu2 = mu1 * mu2
    num = (2.0 * mu1_mu2 + C1) * (2.0 * (c12 * inv_cm - mu1_mu2) + C2)
    mu_sq = mu1 * mu1 + mu2 * mu2
    den = (mu_sq + C1) * ((c11 + c22) * inv_cm - mu_sq + C2)
    ssim_map = num * _recip(den)

    col_sums = jnp.sum(ssim_map, axis=0, keepdims=True)            # (1, GW)
    out_ref[0] = jnp.broadcast_to(col_sums, out_ref.shape[1:])     # (8, GW)


def _const_spec_kwargs():
    """Single-buffer the grid-invariant constants when this jax supports it."""
    try:
        if hasattr(pl, "Buffered") and \
           "pipeline_mode" in inspect.signature(pl.BlockSpec).parameters:
            return {"pipeline_mode": pl.Buffered(1)}
    except (TypeError, ValueError):
        pass
    return {}


_CONST_SPEC_KWARGS = _const_spec_kwargs()


def _build_ssim_call(H, GW, NB, lane_pack, single_buffer_consts):
    in_index = (lambda b: (0, b)) if lane_pack else (lambda b: (b, 0))
    const_kw = _CONST_SPEC_KWARGS if single_buffer_consts else {}
    img_spec = pl.BlockSpec((H, GW), in_index)
    th_spec = pl.BlockSpec((H, H), lambda b: (0, 0), **const_kw)
    twb_spec = pl.BlockSpec((GW, GW), lambda b: (0, 0), **const_kw)
    return pl.pallas_call(
        _ssim_sum_kernel,
        out_shape=jax.ShapeDtypeStruct((NB, 8, GW), jnp.float32),
        grid_spec=pltpu.PrefetchScalarGridSpec(
            num_scalar_prefetch=0,
            grid=(NB,),
            in_specs=[img_spec, img_spec, img_spec, th_spec, twb_spec],
            out_specs=pl.BlockSpec((1, 8, GW), lambda b: (b, 0, 0)),
        ),
        compiler_params=pltpu.CompilerParams(dimension_semantics=("parallel",)),
    )


def ssim_pallas(img1, img2, mask, size_average=True):
    """SSIM.forward(img1, img2, mask) — NCHW inputs, scalar (or per-N) output."""
    N, C, H, W = img1.shape
    NC = N * C
    lane_pack, G = _plan(NC, H, W)
    GW = G * W
    NB = NC // G

    if lane_pack:
        # plane-major -> lane-major: plane p owns lanes [p*W, (p+1)*W)
        def to_layout(x):
            return (x.reshape(NC, H, W).astype(jnp.float32)
                     .transpose(1, 0, 2).reshape(H, NC * W))
    else:
        # natural layout: plane p owns rows [p*H, (p+1)*H) — free reshape
        def to_layout(x):
            return x.reshape(NC * H, W).astype(jnp.float32)

    i1, i2, m = to_layout(img1), to_layout(img2), to_layout(mask)
    th = jnp.asarray(_toeplitz(H))                    # (H, H)
    twb = jnp.asarray(_block_diag(_toeplitz(W), G))   # (GW, GW); == T_W when G == 1

    out = None
    attempts = [True, False] if _CONST_SPEC_KWARGS else [False]
    for single_buffer in attempts:
        try:
            out = _build_ssim_call(H, GW, NB, lane_pack, single_buffer)(i1, i2, m, th, twb)
            break
        except Exception:
            if not single_buffer:     # plain-spec path failed too -> real error
                raise

    col_sums = out[:, 0, :]                                        # (NB, GW)
    plane_sums = col_sums.reshape(NB, G, W).sum(-1).reshape(NC)    # per-plane SSIM sums

    if size_average:
        mean = plane_sums.sum() / (NC * H * W)
        return (mean + 1.0) / 2.0
    per_n = plane_sums.reshape(N, C).sum(axis=1) / (C * H * W)
    return (per_n + 1.0) / 2.0


def ssim_reference(img1, img2, mask, size_average=True):
    """Pure-JAX reference (mirrors F.conv2d with groups=channel)."""
    N, C, H, W = img1.shape
    w = jnp.asarray(_W2D)[None, None]                 # (1, 1, 11, 11)
    w = jnp.tile(w, (C, 1, 1, 1))                     # (C, 1, 11, 11)

    def conv(x):
        return jax.lax.conv_general_dilated(
            x, w, window_strides=(1, 1),
            padding=[(PAD, PAD), (PAD, PAD)],
            dimension_numbers=("NCHW", "OIHW", "NCHW"),
            feature_group_count=C)

    cm = conv(mask) + 1e-10
    mu1 = conv(img1) / cm
    mu2 = conv(img2) / cm
    mu1_sq, mu2_sq, mu1_mu2 = mu1 ** 2, mu2 ** 2, mu1 * mu2
    sigma1_sq = conv(img1 * img1) / cm - mu1_sq
    sigma2_sq = conv(img2 * img2) / cm - mu2_sq
    sigma12 = conv(img1 * img2) / cm - mu1_mu2
    ssim_map = ((2 * mu1_mu2 + C1) * (2 * sigma12 + C2)
                / ((mu1_sq + mu2_sq + C1) * (sigma1_sq + sigma2_sq + C2)))
    if size_average:
        return (ssim_map.mean() + 1.0) / 2.0
    return (ssim_map.mean(axis=(1, 2, 3)) + 1.0) / 2.0


if __name__ == "__main__":
    # --- Test 1: narrow images (W < 128) -> lane-packed path -----------------
    k1, k2, k3 = jax.random.split(jax.random.PRNGKey(0), 3)
    N, C, H, W = 2, 4, 16, 16
    img1 = jax.random.uniform(k1, (N, C, H, W), dtype=jnp.float32)
    img2 = jax.random.uniform(k2, (N, C, H, W), dtype=jnp.float32)
    # strictly positive mask (keeps the normalized division well conditioned)
    mask = jax.random.uniform(k3, (N, C, H, W), dtype=jnp.float32) + 0.5

    out = jax.block_until_ready(ssim_pallas(img1, img2, mask, size_average=True))
    ref = jax.block_until_ready(ssim_reference(img1, img2, mask, size_average=True))
    assert out.shape == () and out.dtype == jnp.float32
    assert np.allclose(np.asarray(out), np.asarray(ref), rtol=1e-4, atol=1e-4), (out, ref)

    out_n = jax.block_until_ready(ssim_pallas(img1, img2, mask, size_average=False))
    ref_n = jax.block_until_ready(ssim_reference(img1, img2, mask, size_average=False))
    assert out_n.shape == (N,)
    assert np.allclose(np.asarray(out_n), np.asarray(ref_n), rtol=1e-4, atol=1e-4), (out_n, ref_n)

    # --- Test 2: lane-dense W (W % 128 == 0) -> natural layout, no transpose -
    k4, k5, k6 = jax.random.split(jax.random.PRNGKey(1), 3)
    N2, C2, H2, W2 = 1, 2, 8, 128
    a1 = jax.random.uniform(k4, (N2, C2, H2, W2), dtype=jnp.float32)
    a2 = jax.random.uniform(k5, (N2, C2, H2, W2), dtype=jnp.float32)
    am = jax.random.uniform(k6, (N2, C2, H2, W2), dtype=jnp.float32) + 0.5

    out2 = jax.block_until_ready(ssim_pallas(a1, a2, am, size_average=True))
    ref2 = jax.block_until_ready(ssim_reference(a1, a2, am, size_average=True))
    assert np.allclose(np.asarray(out2), np.asarray(ref2), rtol=1e-4, atol=1e-4), (out2, ref2)

    print("KERNEL_OK")
</pallas_src>

<mosaic_0001>
module attributes {stable_mosaic.version = 11 : i64} {
  func.func @_ssim_sum_kernel(%arg0: i32, %arg1: memref<16x128xf32, #tpu.memory_space<vmem>>, %arg2: memref<16x128xf32, #tpu.memory_space<vmem>>, %arg3: memref<16x128xf32, #tpu.memory_space<vmem>>, %arg4: memref<16x16xf32, #tpu.memory_space<vmem>>, %arg5: memref<128x128xf32, #tpu.memory_space<vmem>>, %arg6: memref<1x8x128xf32, #tpu.memory_space<vmem>>) attributes {dimension_semantics = [#tpu.dimension_semantics<parallel>], iteration_bounds = array<i64: 1>, scalar_prefetch = 0 : i64, scratch_operands = 0 : i64, tpu.core_type = #tpu.core_type<tc>, window_params = [{transform_indices = @transform_0, window_bounds = array<i64: 16, 128>}, {transform_indices = @transform_1, window_bounds = array<i64: 16, 128>}, {transform_indices = @transform_2, window_bounds = array<i64: 16, 128>}, {pipeline_mode = #tpu.pipeline_mode<synchronous>, transform_indices = @transform_3, window_bounds = array<i64: 16, 16>}, {pipeline_mode = #tpu.pipeline_mode<synchronous>, transform_indices = @transform_4, window_bounds = array<i64: 128, 128>}, {transform_indices = @transform_5, window_bounds = array<i64: 1, 8, 128>}]} {
    %c0 = arith.constant 0 : index
    %c0_0 = arith.constant 0 : index
    %0 = vector.load %arg1[%c0, %c0_0] : memref<16x128xf32, #tpu.memory_space<vmem>>, vector<16x128xf32>
    %c0_1 = arith.constant 0 : index
    %c0_2 = arith.constant 0 : index
    %1 = vector.load %arg2[%c0_1, %c0_2] : memref<16x128xf32, #tpu.memory_space<vmem>>, vector<16x128xf32>
    %c0_3 = arith.constant 0 : index
    %c0_4 = arith.constant 0 : index
    %2 = vector.load %arg3[%c0_3, %c0_4] : memref<16x128xf32, #tpu.memory_space<vmem>>, vector<16x128xf32>
    %c0_5 = arith.constant 0 : index
    %c0_6 = arith.constant 0 : index
    %3 = vector.load %arg4[%c0_5, %c0_6] : memref<16x16xf32, #tpu.memory_space<vmem>>, vector<16x16xf32>
    %c0_7 = arith.constant 0 : index
    %c0_8 = arith.constant 0 : index
    %4 = vector.load %arg5[%c0_7, %c0_8] : memref<128x128xf32, #tpu.memory_space<vmem>>, vector<128x128xf32>
    %5 = arith.mulf %0, %0 : vector<16x128xf32>
    %6 = arith.mulf %1, %1 : vector<16x128xf32>
    %7 = arith.mulf %0, %1 : vector<16x128xf32>
    %8 = tpu.concatenate %2, %0, %1, %5, %6, %7 in 1 : vector<16x128xf32>, vector<16x128xf32>, vector<16x128xf32>, vector<16x128xf32>, vector<16x128xf32>, vector<16x128xf32> -> vector<16x768xf32>
    %cst = arith.constant dense<0.000000e+00> : vector<16x768xf32>
    %9 = tpu.matmul %3, %8, %cst {dimension_numbers = #tpu.dot_dimension_numbers<[1], [0], [0], [1], [0, 0, 1, 1], [], []>} : vector<16x16xf32>, vector<16x768xf32>, vector<16x768xf32> -> vector<16x768xf32>
    %10 = vector.extract_strided_slice %9 {offsets = [0, 0], sizes = [16, 128], strides = [1, 1]} : vector<16x768xf32> to vector<16x128xf32>
    %11 = vector.extract_strided_slice %9 {offsets = [0, 128], sizes = [16, 128], strides = [1, 1]} : vector<16x768xf32> to vector<16x128xf32>
    %12 = vector.extract_strided_slice %9 {offsets = [0, 256], sizes = [16, 128], strides = [1, 1]} : vector<16x768xf32> to vector<16x128xf32>
    %13 = vector.extract_strided_slice %9 {offsets = [0, 384], sizes = [16, 128], strides = [1, 1]} : vector<16x768xf32> to vector<16x128xf32>
    %14 = vector.extract_strided_slice %9 {offsets = [0, 512], sizes = [16, 128], strides = [1, 1]} : vector<16x768xf32> to vector<16x128xf32>
    %15 = vector.extract_strided_slice %9 {offsets = [0, 640], sizes = [16, 128], strides = [1, 1]} : vector<16x768xf32> to vector<16x128xf32>
    %16 = tpu.concatenate %10, %11, %12, %13, %14, %15 in 0 : vector<16x128xf32>, vector<16x128xf32>, vector<16x128xf32>, vector<16x128xf32>, vector<16x128xf32>, vector<16x128xf32> -> vector<96x128xf32>
    %cst_9 = arith.constant dense<0.000000e+00> : vector<96x128xf32>
    %17 = tpu.matmul %16, %4, %cst_9 {dimension_numbers = #tpu.dot_dimension_numbers<[1], [0], [0], [1], [0, 0, 1, 1], [], []>} : vector<96x128xf32>, vector<128x128xf32>, vector<96x128xf32> -> vector<96x128xf32>
    %18 = vector.extract_strided_slice %17 {offsets = [0, 0], sizes = [16, 128], strides = [1, 1]} : vector<96x128xf32> to vector<16x128xf32>
    %19 = vector.extract_strided_slice %17 {offsets = [16, 0], sizes = [16, 128], strides = [1, 1]} : vector<96x128xf32> to vector<16x128xf32>
    %20 = vector.extract_strided_slice %17 {offsets = [32, 0], sizes = [16, 128], strides = [1, 1]} : vector<96x128xf32> to vector<16x128xf32>
    %21 = vector.extract_strided_slice %17 {offsets = [48, 0], sizes = [16, 128], strides = [1, 1]} : vector<96x128xf32> to vector<16x128xf32>
    %22 = vector.extract_strided_slice %17 {offsets = [64, 0], sizes = [16, 128], strides = [1, 1]} : vector<96x128xf32> to vector<16x128xf32>
    %23 = vector.extract_strided_slice %17 {offsets = [80, 0], sizes = [16, 128], strides = [1, 1]} : vector<96x128xf32> to vector<16x128xf32>
    %cst_10 = arith.constant 1.000000e-10 : f32
    %24 = vector.broadcast %cst_10 : f32 to vector<16x128xf32>
    %25 = arith.addf %18, %24 : vector<16x128xf32>
    %26 = tpu.reciprocal %25 {approx = true} : vector<16x128xf32> -> vector<16x128xf32>
    %27 = arith.mulf %25, %26 : vector<16x128xf32>
    %cst_11 = arith.constant 2.000000e+00 : f32
    %28 = vector.broadcast %cst_11 : f32 to vector<16x128xf32>
    %29 = arith.subf %28, %27 : vector<16x128xf32>
    %30 = arith.mulf %26, %29 : vector<16x128xf32>
    %31 = arith.mulf %19, %30 : vector<16x128xf32>
    %32 = arith.mulf %20, %30 : vector<16x128xf32>
    %33 = arith.mulf %31, %32 : vector<16x128xf32>
    %cst_12 = arith.constant 2.000000e+00 : f32
    %34 = vector.broadcast %cst_12 : f32 to vector<16x128xf32>
    %35 = arith.mulf %34, %33 : vector<16x128xf32>
    %cst_13 = arith.constant 9.99999974E-5 : f32
    %36 = vector.broadcast %cst_13 : f32 to vector<16x128xf32>
    %37 = arith.addf %35, %36 : vector<16x128xf32>
    %38 = arith.mulf %23, %30 : vector<16x128xf32>
    %39 = arith.subf %38, %33 : vector<16x128xf32>
    %cst_14 = arith.constant 2.000000e+00 : f32
    %40 = vector.broadcast %cst_14 : f32 to vector<16x128xf32>
    %41 = arith.mulf %40, %39 : vector<16x128xf32>
    %cst_15 = arith.constant 8.99999984E-4 : f32
    %42 = vector.broadcast %cst_15 : f32 to vector<16x128xf32>
    %43 = arith.addf %41, %42 : vector<16x128xf32>
    %44 = arith.mulf %37, %43 : vector<16x128xf32>
    %45 = arith.mulf %31, %31 : vector<16x128xf32>
    %46 = arith.mulf %32, %32 : vector<16x128xf32>
    %47 = arith.addf %45, %46 : vector<16x128xf32>
    %cst_16 = arith.constant 9.99999974E-5 : f32
    %48 = vector.broadcast %cst_16 : f32 to vector<16x128xf32>
    %49 = arith.addf %47, %48 : vector<16x128xf32>
    %50 = arith.addf %21, %22 : vector<16x128xf32>
    %51 = arith.mulf %50, %30 : vector<16x128xf32>
    %52 = arith.subf %51, %47 : vector<16x128xf32>
    %cst_17 = arith.constant 8.99999984E-4 : f32
    %53 = vector.broadcast %cst_17 : f32 to vector<16x128xf32>
    %54 = arith.addf %52, %53 : vector<16x128xf32>
    %55 = arith.mulf %49, %54 : vector<16x128xf32>
    %56 = tpu.reciprocal %55 {approx = true} : vector<16x128xf32> -> vector<16x128xf32>
    %57 = arith.mulf %55, %56 : vector<16x128xf32>
    %cst_18 = arith.constant 2.000000e+00 : f32
    %58 = vector.broadcast %cst_18 : f32 to vector<16x128xf32>
    %59 = arith.subf %58, %57 : vector<16x128xf32>
    %60 = arith.mulf %56, %59 : vector<16x128xf32>
    %61 = arith.mulf %44, %60 : vector<16x128xf32>
    %cst_19 = arith.constant dense<0.000000e+00> : vector<128xf32>
    %62 = vector.multi_reduction <add>, %61, %cst_19 [0] : vector<16x128xf32> to vector<128xf32>
    %63 = vector.shape_cast %62 : vector<128xf32> to vector<1x128xf32>
    %64 = vector.shape_cast %63 : vector<1x128xf32> to vector<1x128xf32>
    %65 = vector.broadcast %64 : vector<1x128xf32> to vector<8x128xf32>
    %c0_20 = arith.constant 0 : index
    %c0_21 = arith.constant 0 : index
    %c0_22 = arith.constant 0 : index
    %66 = vector.load %arg6[%c0_20, %c0_21, %c0_22] : memref<1x8x128xf32, #tpu.memory_space<vmem>>, vector<1x8x128xf32>
    %67 = vector.shape_cast %66 : vector<1x8x128xf32> to vector<8x128xf32>
    %68 = vector.shape_cast %65 : vector<8x128xf32> to vector<1x8x128xf32>
    tpu.vector_store %arg6[%c0_20, %c0_21, %c0_22], %68 {strides = array<i32>} : memref<1x8x128xf32, #tpu.memory_space<vmem>>, vector<1x8x128xf32>,
    return
  }
  func.func @transform_0(%arg0: i32) -> (i32, i32) {
    %c0_i32 = arith.constant 0 : i32
    %c0_i32_0 = arith.constant 0 : i32
    return %c0_i32, %arg0 : i32, i32
  }
  func.func @transform_1(%arg0: i32) -> (i32, i32) {
    %c0_i32 = arith.constant 0 : i32
    %c0_i32_0 = arith.constant 0 : i32
    return %c0_i32, %arg0 : i32, i32
  }
  func.func @transform_2(%arg0: i32) -> (i32, i32) {
    %c0_i32 = arith.constant 0 : i32
    %c0_i32_0 = arith.constant 0 : i32
    return %c0_i32, %arg0 : i32, i32
  }
  func.func @transform_3(%arg0: i32) -> (i32, i32) {
    %c0_i32 = arith.constant 0 : i32
    %c0_i32_0 = arith.constant 0 : i32
    %c0_i32_1 = arith.constant 0 : i32
    return %c0_i32, %c0_i32_0 : i32, i32
  }
  func.func @transform_4(%arg0: i32) -> (i32, i32) {
    %c0_i32 = arith.constant 0 : i32
    %c0_i32_0 = arith.constant 0 : i32
    %c0_i32_1 = arith.constant 0 : i32
    return %c0_i32, %c0_i32_0 : i32, i32
  }
  func.func @transform_5(%arg0: i32) -> (i32, i32, i32) {
    %c0_i32 = arith.constant 0 : i32
    %c0_i32_0 = arith.constant 0 : i32
    %c0_i32_1 = arith.constant 0 : i32
    return %arg0, %c0_i32, %c0_i32_0 : i32, i32, i32
  }
}

module attributes {stable_mosaic.version = 11 : i64} {
  func.func @_ssim_sum_kernel(%arg0: i32, %arg1: memref<16x128xf32, #tpu.memory_space<vmem>>, %arg2: memref<16x128xf32, #tpu.memory_space<vmem>>, %arg3: memref<16x128xf32, #tpu.memory_space<vmem>>, %arg4: memref<16x16xf32, #tpu.memory_space<vmem>>, %arg5: memref<128x128xf32, #tpu.memory_space<vmem>>, %arg6: memref<1x8x128xf32, #tpu.memory_space<vmem>>) attributes {dimension_semantics = [#tpu.dimension_semantics<parallel>], iteration_bounds = array<i64: 1>, scalar_prefetch = 0 : i64, scratch_operands = 0 : i64, tpu.core_type = #tpu.core_type<tc>, window_params = [{transform_indices = @transform_0, window_bounds = array<i64: 16, 128>}, {transform_indices = @transform_1, window_bounds = array<i64: 16, 128>}, {transform_indices = @transform_2, window_bounds = array<i64: 16, 128>}, {pipeline_mode = #tpu.pipeline_mode<synchronous>, transform_indices = @transform_3, window_bounds = array<i64: 16, 16>}, {pipeline_mode = #tpu.pipeline_mode<synchronous>, transform_indices = @transform_4, window_bounds = array<i64: 128, 128>}, {transform_indices = @transform_5, window_bounds = array<i64: 1, 8, 128>}]} {
    %c0 = arith.constant 0 : index
    %c0_0 = arith.constant 0 : index
    %0 = vector.load %arg1[%c0, %c0_0] : memref<16x128xf32, #tpu.memory_space<vmem>>, vector<16x128xf32>
    %c0_1 = arith.constant 0 : index
    %c0_2 = arith.constant 0 : index
    %1 = vector.load %arg2[%c0_1, %c0_2] : memref<16x128xf32, #tpu.memory_space<vmem>>, vector<16x128xf32>
    %c0_3 = arith.constant 0 : index
    %c0_4 = arith.constant 0 : index
    %2 = vector.load %arg3[%c0_3, %c0_4] : memref<16x128xf32, #tpu.memory_space<vmem>>, vector<16x128xf32>
    %c0_5 = arith.constant 0 : index
    %c0_6 = arith.constant 0 : index
    %3 = vector.load %arg4[%c0_5, %c0_6] : memref<16x16xf32, #tpu.memory_space<vmem>>, vector<16x16xf32>
    %c0_7 = arith.constant 0 : index
    %c0_8 = arith.constant 0 : index
    %4 = vector.load %arg5[%c0_7, %c0_8] : memref<128x128xf32, #tpu.memory_space<vmem>>, vector<128x128xf32>
    %5 = arith.mulf %0, %0 : vector<16x128xf32>
    %6 = arith.mulf %1, %1 : vector<16x128xf32>
    %7 = arith.mulf %0, %1 : vector<16x128xf32>
    %8 = tpu.concatenate %2, %0, %1, %5, %6, %7 in 1 : vector<16x128xf32>, vector<16x128xf32>, vector<16x128xf32>, vector<16x128xf32>, vector<16x128xf32>, vector<16x128xf32> -> vector<16x768xf32>
    %cst = arith.constant dense<0.000000e+00> : vector<16x768xf32>
    %9 = tpu.matmul %3, %8, %cst {dimension_numbers = #tpu.dot_dimension_numbers<[1], [0], [0], [1], [0, 0, 1, 1], [], []>} : vector<16x16xf32>, vector<16x768xf32>, vector<16x768xf32> -> vector<16x768xf32>
    %10 = vector.extract_strided_slice %9 {offsets = [0, 0], sizes = [16, 128], strides = [1, 1]} : vector<16x768xf32> to vector<16x128xf32>
    %11 = vector.extract_strided_slice %9 {offsets = [0, 128], sizes = [16, 128], strides = [1, 1]} : vector<16x768xf32> to vector<16x128xf32>
    %12 = vector.extract_strided_slice %9 {offsets = [0, 256], sizes = [16, 128], strides = [1, 1]} : vector<16x768xf32> to vector<16x128xf32>
    %13 = vector.extract_strided_slice %9 {offsets = [0, 384], sizes = [16, 128], strides = [1, 1]} : vector<16x768xf32> to vector<16x128xf32>
    %14 = vector.extract_strided_slice %9 {offsets = [0, 512], sizes = [16, 128], strides = [1, 1]} : vector<16x768xf32> to vector<16x128xf32>
    %15 = vector.extract_strided_slice %9 {offsets = [0, 640], sizes = [16, 128], strides = [1, 1]} : vector<16x768xf32> to vector<16x128xf32>
    %16 = tpu.concatenate %10, %11, %12, %13, %14, %15 in 0 : vector<16x128xf32>, vector<16x128xf32>, vector<16x128xf32>, vector<16x128xf32>, vector<16x128xf32>, vector<16x128xf32> -> vector<96x128xf32>
    %cst_9 = arith.constant dense<0.000000e+00> : vector<96x128xf32>
    %17 = tpu.matmul %16, %4, %cst_9 {dimension_numbers = #tpu.dot_dimension_numbers<[1], [0], [0], [1], [0, 0, 1, 1], [], []>} : vector<96x128xf32>, vector<128x128xf32>, vector<96x128xf32> -> vector<96x128xf32>
    %18 = vector.extract_strided_slice %17 {offsets = [0, 0], sizes = [16, 128], strides = [1, 1]} : vector<96x128xf32> to vector<16x128xf32>
    %19 = vector.extract_strided_slice %17 {offsets = [16, 0], sizes = [16, 128], strides = [1, 1]} : vector<96x128xf32> to vector<16x128xf32>
    %20 = vector.extract_strided_slice %17 {offsets = [32, 0], sizes = [16, 128], strides = [1, 1]} : vector<96x128xf32> to vector<16x128xf32>
    %21 = vector.extract_strided_slice %17 {offsets = [48, 0], sizes = [16, 128], strides = [1, 1]} : vector<96x128xf32> to vector<16x128xf32>
    %22 = vector.extract_strided_slice %17 {offsets = [64, 0], sizes = [16, 128], strides = [1, 1]} : vector<96x128xf32> to vector<16x128xf32>
    %23 = vector.extract_strided_slice %17 {offsets = [80, 0], sizes = [16, 128], strides = [1, 1]} : vector<96x128xf32> to vector<16x128xf32>
    %cst_10 = arith.constant 1.000000e-10 : f32
    %24 = vector.broadcast %cst_10 : f32 to vector<16x128xf32>
    %25 = arith.addf %18, %24 : vector<16x128xf32>
    %26 = tpu.reciprocal %25 {approx = true} : vector<16x128xf32> -> vector<16x128xf32>
    %27 = arith.mulf %25, %26 : vector<16x128xf32>
    %cst_11 = arith.constant 2.000000e+00 : f32
    %28 = vector.broadcast %cst_11 : f32 to vector<16x128xf32>
    %29 = arith.subf %28, %27 : vector<16x128xf32>
    %30 = arith.mulf %26, %29 : vector<16x128xf32>
    %31 = arith.mulf %19, %30 : vector<16x128xf32>
    %32 = arith.mulf %20, %30 : vector<16x128xf32>
    %33 = arith.mulf %31, %32 : vector<16x128xf32>
    %cst_12 = arith.constant 2.000000e+00 : f32
    %34 = vector.broadcast %cst_12 : f32 to vector<16x128xf32>
    %35 = arith.mulf %34, %33 : vector<16x128xf32>
    %cst_13 = arith.constant 9.99999974E-5 : f32
    %36 = vector.broadcast %cst_13 : f32 to vector<16x128xf32>
    %37 = arith.addf %35, %36 : vector<16x128xf32>
    %38 = arith.mulf %23, %30 : vector<16x128xf32>
    %39 = arith.subf %38, %33 : vector<16x128xf32>
    %cst_14 = arith.constant 2.000000e+00 : f32
    %40 = vector.broadcast %cst_14 : f32 to vector<16x128xf32>
    %41 = arith.mulf %40, %39 : vector<16x128xf32>
    %cst_15 = arith.constant 8.99999984E-4 : f32
    %42 = vector.broadcast %cst_15 : f32 to vector<16x128xf32>
    %43 = arith.addf %41, %42 : vector<16x128xf32>
    %44 = arith.mulf %37, %43 : vector<16x128xf32>
    %45 = arith.mulf %31, %31 : vector<16x128xf32>
    %46 = arith.mulf %32, %32 : vector<16x128xf32>
    %47 = arith.addf %45, %46 : vector<16x128xf32>
    %cst_16 = arith.constant 9.99999974E-5 : f32
    %48 = vector.broadcast %cst_16 : f32 to vector<16x128xf32>
    %49 = arith.addf %47, %48 : vector<16x128xf32>
    %50 = arith.addf %21, %22 : vector<16x128xf32>
    %51 = arith.mulf %50, %30 : vector<16x128xf32>
    %52 = arith.subf %51, %47 : vector<16x128xf32>
    %cst_17 = arith.constant 8.99999984E-4 : f32
    %53 = vector.broadcast %cst_17 : f32 to vector<16x128xf32>
    %54 = arith.addf %52, %53 : vector<16x128xf32>
    %55 = arith.mulf %49, %54 : vector<16x128xf32>
    %56 = tpu.reciprocal %55 {approx = true} : vector<16x128xf32> -> vector<16x128xf32>
    %57 = arith.mulf %55, %56 : vector<16x128xf32>
    %cst_18 = arith.constant 2.000000e+00 : f32
    %58 = vector.broadcast %cst_18 : f32 to vector<16x128xf32>
    %59 = arith.subf %58, %57 : vector<16x128xf32>
    %60 = arith.mulf %56, %59 : vector<16x128xf32>
    %61 = arith.mulf %44, %60 : vector<16x128xf32>
    %cst_19 = arith.constant dense<0.000000e+00> : vector<128xf32>
    %62 = vector.multi_reduction <add>, %61, %cst_19 [0] : vector<16x128xf32> to vector<128xf32>
    %63 = vector.shape_cast %62 : vector<128xf32> to vector<1x128xf32>
    %64 = vector.shape_cast %63 : vector<1x128xf32> to vector<1x128xf32>
    %65 = vector.broadcast %64 : vector<1x128xf32> to vector<8x128xf32>
    %c0_20 = arith.constant 0 : index
    %c0_21 = arith.constant 0 : index
    %c0_22 = arith.constant 0 : index
    %66 = vector.load %arg6[%c0_20, %c0_21, %c0_22] : memref<1x8x128xf32, #tpu.memory_space<vmem>>, vector<1x8x128xf32>
    %67 = vector.shape_cast %66 : vector<1x8x128xf32> to vector<8x128xf32>
    %68 = vector.shape_cast %65 : vector<8x128xf32> to vector<1x8x128xf32>
    tpu.vector_store %arg6[%c0_20, %c0_21, %c0_22], %68 {strides = array<i32>} : memref<1x8x128xf32, #tpu.memory_space<vmem>>, vector<1x8x128xf32>,
    return
  }
  func.func @transform_0(%arg0: i32) -> (i32, i32) {
    %c0_i32 = arith.constant 0 : i32
    %c0_i32_0 = arith.constant 0 : i32
    return %c0_i32, %arg0 : i32, i32
  }
  func.func @transform_1(%arg0: i32) -> (i32, i32) {
    %c0_i32 = arith.constant 0 : i32
    %c0_i32_0 = arith.constant 0 : i32
    return %c0_i32, %arg0 : i32, i32
  }
  func.func @transform_2(%arg0: i32) -> (i32, i32) {
    %c0_i32 = arith.constant 0 : i32
    %c0_i32_0 = arith.constant 0 : i32
    return %c0_i32, %arg0 : i32, i32
  }
  func.func @transform_3(%arg0: i32) -> (i32, i32) {
    %c0_i32 = arith.constant 0 : i32
    %c0_i32_0 = arith.constant 0 : i32
    %c0_i32_1 = arith.constant 0 : i32
    return %c0_i32, %c0_i32_0 : i32, i32
  }
  func.func @transform_4(%arg0: i32) -> (i32, i32) {
    %c0_i32 = arith.constant 0 : i32
    %c0_i32_0 = arith.constant 0 : i32
    %c0_i32_1 = arith.constant 0 : i32
    return %c0_i32, %c0_i32_0 : i32, i32
  }
  func.func @transform_5(%arg0: i32) -> (i32, i32, i32) {
    %c0_i32 = arith.constant 0 : i32
    %c0_i32_0 = arith.constant 0 : i32
    %c0_i32_1 = arith.constant 0 : i32
    return %arg0, %c0_i32, %c0_i32_0 : i32, i32, i32
  }
}

</mosaic_0001>

<llo_original>
// kernel: tpu_custom_call.1
$region0: #{tpu_custom_call.1}
  #allocation0 [shape = 'u32[]', space=smem, size = 0x4, offset = 0x4, fixed_abs, tag = 'smem constant byte address 0x4 - core index']
  #allocation1 [shape = 'u32[72,128]{1,0:T(1,128)}', space=vmem, size = 0x9000, scoped, tag = 'internal scratch']
  %s0 = inlined_call_operand.hbm [shape: f32[16,128], index: 0, kind: input, shape index: {}]
  %s1 = inlined_call_operand.hbm [shape: f32[16,128], index: 1, kind: input, shape index: {}]
  %s2 = inlined_call_operand.hbm [shape: f32[16,128], index: 2, kind: input, shape index: {}]
  %s3 = inlined_call_operand.hbm [shape: f32[16,16], index: 3, kind: input, shape index: {}]
  %s4 = inlined_call_operand.hbm [shape: f32[128,128], index: 4, kind: input, shape index: {}]
  %s5 = inlined_call_operand.hbm [shape: f32[1,8,128], index: 5, kind: output, shape index: {}]
  %s6 = sld [smem:[#allocation0]]
  $region50: #{tpu_custom_call.1} parent=0
    _
  %s8 = ssub.s32 1, %s6
  %s9 = scalar_select 0, %s8, %s6
  $region1: #{tpu_custom_call.1} parent=0
    #allocation2 [shape = 'u8[8192]{0}', space=vmem, size = 0x2000, scoped, tag = 'input window, operand 0, single buffered']
    #allocation3 [shape = 's32[1]{0}', space=sflag, size = 0x4, scoped, tag = 'scoped memory for tpu_custom_call.1']
    #allocation4 [shape = 's32[1]{0}', space=sflag, size = 0x4, scoped, tag = 'scoped memory for tpu_custom_call.1']
    #allocation5 [shape = 'u8[8192]{0}', space=vmem, size = 0x2000, scoped, tag = 'input window, operand 1, single buffered']
    #allocation6 [shape = 's32[1]{0}', space=sflag, size = 0x4, scoped, tag = 'scoped memory for tpu_custom_call.1']
    #allocation7 [shape = 'u8[8192]{0}', space=vmem, size = 0x2000, scoped, tag = 'input window, operand 2, single buffered']
    #allocation8 [shape = 'u8[8192]{0}', space=vmem, size = 0x2000, scoped, tag = 'input window, operand 3, single buffered']
    #allocation9 [shape = 's32[1]{0}', space=sflag, size = 0x4, scoped, tag = 'scoped memory for tpu_custom_call.1']
    #allocation10 [shape = 'u8[65536]{0}', space=vmem, size = 0x10000, scoped, tag = 'input window, operand 4, single buffered']
    #allocation11 [shape = 'u8[4096]{0}', space=vmem, size = 0x1000, scoped, tag = 'output window, operand 0, single buffered']
    %10 = vsyncpa [#allocation3], 0
    %11 = vsyncpa [#allocation6], 0
    %12 = vsyncpa [#allocation9], 0
    %13 = vsyncpa [#allocation4], 0
    // Predicated region
    $region2: #{tpu_custom_call.1} parent=1 // pred_check
      _
    $region3: #{tpu_custom_call.1} parent=1 // pred_check_branch
      %15 = sbr.rel (0) target = $region5
    $region4: #{tpu_custom_call.1} parent=1 // pred_region
      %17 = vsyncadd [#allocation3], 0
      %s18 = sshll.u32 %s0, 4
      %s19 = int_to_ptr.hbm [resolvable:$true] %s18
      %s20 = sshll.u32 [#allocation2], 4
      %s21 = int_to_ptr.vmem [resolvable:$true] %s20
      %26 = dma.hbm_to_vmem [thread:$0]  %s19, 256, %s21, [#allocation3], 128, 128, 8
    $region5: #{tpu_custom_call.1} parent=1 // pred_fallthru
      _
    // Predicated region
    $region6: #{tpu_custom_call.1} parent=1 // pred_check
      _
    $region7: #{tpu_custom_call.1} parent=1 // pred_check_branch
      %28 = sbr.rel (0) target = $region9
    $region8: #{tpu_custom_call.1} parent=1 // pred_region
      %30 = vsyncadd [#allocation6], 0
      %s31 = sshll.u32 %s1, 4
      %s32 = int_to_ptr.hbm [resolvable:$true] %s31
      %s33 = sshll.u32 [#allocation5], 4
      %s34 = int_to_ptr.vmem [resolvable:$true] %s33
      %39 = dma.hbm_to_vmem [thread:$0]  %s32, 256, %s34, [#allocation6], 128, 128, 8
    $region9: #{tpu_custom_call.1} parent=1 // pred_fallthru
      _
    // Predicated region
    $region10: #{tpu_custom_call.1} parent=1 // pred_check
      _
    $region11: #{tpu_custom_call.1} parent=1 // pred_check_branch
      %41 = sbr.rel (0) target = $region13
    $region12: #{tpu_custom_call.1} parent=1 // pred_region
      %43 = vsyncadd [#allocation6], 0
      %s44 = sshll.u32 %s2, 4
      %s45 = int_to_ptr.hbm [resolvable:$true] %s44
      %s46 = sshll.u32 [#allocation7], 4
      %s47 = int_to_ptr.vmem [resolvable:$true] %s46
      %52 = dma.hbm_to_vmem [thread:$0]  %s45, 256, %s47, [#allocation6], 128, 128, 8
    $region13: #{tpu_custom_call.1} parent=1 // pred_fallthru
      _
    // Predicated region
    $region14: #{tpu_custom_call.1} parent=1 // pred_check
      _
    $region15: #{tpu_custom_call.1} parent=1 // pred_check_branch
      %54 = sbr.rel (0) target = $region17
    $region16: #{tpu_custom_call.1} parent=1 // pred_region
      %56 = vsyncadd [#allocation9], 0
      %s57 = sshll.u32 %s3, 4
      %s58 = int_to_ptr.hbm [resolvable:$true] %s57
      %s59 = sshll.u32 [#allocation8], 4
      %s60 = int_to_ptr.vmem [resolvable:$true] %s59
      %65 = dma.hbm_to_vmem [thread:$0]  %s58, 256, %s60, [#allocation9], 128, 128, 8
    $region17: #{tpu_custom_call.1} parent=1 // pred_fallthru
      _
    // Predicated region
    $region18: #{tpu_custom_call.1} parent=1 // pred_check
      _
    $region19: #{tpu_custom_call.1} parent=1 // pred_check_branch
      %67 = sbr.rel (0) target = $region21
    $region20: #{tpu_custom_call.1} parent=1 // pred_region
      %69 = vsyncadd [#allocation9], 0
      %s70 = sshll.u32 %s4, 4
      %s71 = int_to_ptr.hbm [resolvable:$true] %s70
      %s72 = sshll.u32 [#allocation10], 4
      %s73 = int_to_ptr.vmem [resolvable:$true] %s72
      %78 = dma.hbm_to_vmem [thread:$0]  %s71, 2048, %s73, [#allocation9], 128, 128, 8
    $region21: #{tpu_custom_call.1} parent=1 // pred_fallthru
      _
    // Predicated region
    $region22: #{tpu_custom_call.1} parent=1 // pred_check
      _
    $region23: #{tpu_custom_call.1} parent=1 // pred_check_branch
      %80 = sbr.rel (0) target = $region25
    $region24: #{tpu_custom_call.1} parent=1 // pred_region
      %82 = dma.done [#allocation3], 256
    $region25: #{tpu_custom_call.1} parent=1 // pred_fallthru
      _
    // Predicated region
    $region26: #{tpu_custom_call.1} parent=1 // pred_check
      _
    $region27: #{tpu_custom_call.1} parent=1 // pred_check_branch
      %84 = sbr.rel (0) target = $region29
    $region28: #{tpu_custom_call.1} parent=1 // pred_region
      %86 = dma.done [#allocation6], 256
    $region29: #{tpu_custom_call.1} parent=1 // pred_fallthru
      _
    // Predicated region
    $region30: #{tpu_custom_call.1} parent=1 // pred_check
      _
    $region31: #{tpu_custom_call.1} parent=1 // pred_check_branch
      %88 = sbr.rel (0) target = $region33
    $region32: #{tpu_custom_call.1} parent=1 // pred_region
      %90 = dma.done [#allocation6], 256
    $region33: #{tpu_custom_call.1} parent=1 // pred_fallthru
      _
    // Predicated region
    $region34: #{tpu_custom_call.1} parent=1 // pred_check
      _
    $region35: #{tpu_custom_call.1} parent=1 // pred_check_branch
      %92 = sbr.rel (0) target = $region37
    $region36: #{tpu_custom_call.1} parent=1 // pred_region
      %94 = dma.done [#allocation9], 256
    $region37: #{tpu_custom_call.1} parent=1 // pred_fallthru
      _
    // Predicated region
    $region38: #{tpu_custom_call.1} parent=1 // pred_check
      _
    $region39: #{tpu_custom_call.1} parent=1 // pred_check_branch
      %96 = sbr.rel (0) target = $region41
    $region40: #{tpu_custom_call.1} parent=1 // pred_region
      %98 = dma.done [#allocation9], 2048
    $region41: #{tpu_custom_call.1} parent=1 // pred_fallthru
      _
    %v99 = vld [vmem:[#allocation2] sm:$0xff]
    %v100 = vld [vmem:[#allocation2 + $0x8] sm:$0xff]
    %v101 = vld [vmem:[#allocation5] sm:$0xff]
    %v102 = vld [vmem:[#allocation5 + $0x8] sm:$0xff]
    %v103 = vld [vmem:[#allocation7] sm:$0xff]
    %v104 = vld [vmem:[#allocation7 + $0x8] sm:$0xff]
    %v105 = vld [vmem:[#allocation8] sm:$0xff]
    %v106 = vld [vmem:[#allocation8 + $0x8] sm:$0xff]
    %v107 = vld [vmem:[#allocation10] sm:$0xff]
    %v108 = vld [vmem:[#allocation10 + $0x8] sm:$0xff]
    %v109 = vld [vmem:[#allocation10 + $0x10] sm:$0xff]
    %v110 = vld [vmem:[#allocation10 + $0x18] sm:$0xff]
    %v111 = vld [vmem:[#allocation10 + $0x20] sm:$0xff]
    %v112 = vld [vmem:[#allocation10 + $0x28] sm:$0xff]
    %v113 = vld [vmem:[#allocation10 + $0x30] sm:$0xff]
    %v114 = vld [vmem:[#allocation10 + $0x38] sm:$0xff]
    %v115 = vld [vmem:[#allocation10 + $0x40] sm:$0xff]
    %v116 = vld [vmem:[#allocation10 + $0x48] sm:$0xff]
    %v117 = vld [vmem:[#allocation10 + $0x50] sm:$0xff]
    %v118 = vld [vmem:[#allocation10 + $0x58] sm:$0xff]
    %v119 = vld [vmem:[#allocation10 + $0x60] sm:$0xff]
    %v120 = vld [vmem:[#allocation10 + $0x68] sm:$0xff]
    %v121 = vld [vmem:[#allocation10 + $0x70] sm:$0xff]
    %v122 = vld [vmem:[#allocation10 + $0x78] sm:$0xff]
    %v123 = vmul.f32 %v99, %v99
    %v124 = vmul.f32 %v100, %v100
    %v125 = vmul.f32 %v101, %v101
    %v126 = vmul.f32 %v102, %v102
    %v127 = vmul.f32 %v99, %v101
    %v128 = vmul.f32 %v100, %v102
    %vm129 = vcmask 130048
    %v131 = vsel %vm129, %v105, 0
    %v134 = vsel %vm129, %v106, 0
    %136 = vmatpush.msra.mxu0 0.0
    %137 = vmatpush.msra.mxu0 0.0
    %138 = vmatpush.msra.mxu0 0.0
    %139 = vmatpush.msra.mxu0 0.0
    %140 = vmatpush.msra.mxu0 0.0
    %141 = vmatpush.msra.mxu0 0.0
    %142 = vmatpush.msra.mxu0 0.0
    %143 = vmatpush.msra.mxu0 0.0
    %144 = vmatpush.msra.mxu0 0.0
    %145 = vmatpush.msra.mxu0 0.0
    %146 = vmatpush.msra.mxu0 0.0
    %147 = vmatpush.msra.mxu0 0.0
    %148 = vmatpush.msra.mxu0 0.0
    %149 = vmatpush.msra.mxu0 0.0
    %150 = vmatpush.msra.mxu0 %v104
    %151 = vmatpush.msra.mxu0 %v103
    %152 = vmatmul.f32.gmra.mxu0 %v131
    %v153 = vpop.f32.mrf.mxu0
    %v154 = vadd.f32 0.0, %v153
    %155 = vmatmul.f32.gmra.mxu0 %v134
    %v156 = vpop.f32.mrf.mxu0
    %v157 = vadd.f32 0.0, %v156
    %158 = vdwg.mxu0
    %159 = vmatpush.msra.mxu0 0.0
    %160 = vmatpush.msra.mxu0 0.0
    %161 = vmatpush.msra.mxu0 0.0
    %162 = vmatpush.msra.mxu0 0.0
    %163 = vmatpush.msra.mxu0 0.0
    %164 = vmatpush.msra.mxu0 0.0
    %165 = vmatpush.msra.mxu0 0.0
    %166 = vmatpush.msra.mxu0 0.0
    %167 = vmatpush.msra.mxu0 0.0
    %168 = vmatpush.msra.mxu0 0.0
    %169 = vmatpush.msra.mxu0 0.0
    %170 = vmatpush.msra.mxu0 0.0
    %171 = vmatpush.msra.mxu0 0.0
    %172 = vmatpush.msra.mxu0 0.0
    %173 = vmatpush.msra.mxu0 %v100
    %174 = vmatpush.msra.mxu0 %v99
    %175 = vmatmul.f32.gmra.mxu0 %v131
    %v176 = vpop.f32.mrf.mxu0
    %v177 = vadd.f32 0.0, %v176
    %178 = vmatmul.f32.gmra.mxu0 %v134
    %v179 = vpop.f32.mrf.mxu0
    %v180 = vadd.f32 0.0, %v179
    %181 = vdwg.mxu0
    %182 = vmatpush.msra.mxu0 0.0
    %183 = vmatpush.msra.mxu0 0.0
    %184 = vmatpush.msra.mxu0 0.0
    %185 = vmatpush.msra.mxu0 0.0
    %186 = vmatpush.msra.mxu0 0.0
    %187 = vmatpush.msra.mxu0 0.0
    %188 = vmatpush.msra.mxu0 0.0
    %189 = vmatpush.msra.mxu0 0.0
    %190 = vmatpush.msra.mxu0 0.0
    %191 = vmatpush.msra.mxu0 0.0
    %192 = vmatpush.msra.mxu0 0.0
    %193 = vmatpush.msra.mxu0 0.0
    %194 = vmatpush.msra.mxu0 0.0
    %195 = vmatpush.msra.mxu0 0.0
    %196 = vmatpush.msra.mxu0 %v102
    %197 = vmatpush.msra.mxu0 %v101
    %198 = vmatmul.f32.gmra.mxu0 %v131
    %v199 = vpop.f32.mrf.mxu0
    %v200 = vadd.f32 0.0, %v199
    %201 = vmatmul.f32.gmra.mxu0 %v134
    %v202 = vpop.f32.mrf.mxu0
    %v203 = vadd.f32 0.0, %v202
    %204 = vdwg.mxu0
    %205 = vmatpush.msra.mxu0 0.0
    %206 = vmatpush.msra.mxu0 0.0
    %207 = vmatpush.msra.mxu0 0.0
    %208 = vmatpush.msra.mxu0 0.0
    %209 = vmatpush.msra.mxu0 0.0
    %210 = vmatpush.msra.mxu0 0.0
    %211 = vmatpush.msra.mxu0 0.0
    %212 = vmatpush.msra.mxu0 0.0
    %213 = vmatpush.msra.mxu0 0.0
    %214 = vmatpush.msra.mxu0 0.0
    %215 = vmatpush.msra.mxu0 0.0
    %216 = vmatpush.msra.mxu0 0.0
    %217 = vmatpush.msra.mxu0 0.0
    %218 = vmatpush.msra.mxu0 0.0
    %219 = vmatpush.msra.mxu0 %v124
    %220 = vmatpush.msra.mxu0 %v123
    %221 = vmatmul.f32.gmra.mxu0 %v131
    %v222 = vpop.f32.mrf.mxu0
    %v223 = vadd.f32 0.0, %v222
    %224 = vmatmul.f32.gmra.mxu0 %v134
    %v225 = vpop.f32.mrf.mxu0
    %v226 = vadd.f32 0.0, %v225
    %227 = vdwg.mxu0
    %228 = vmatpush.msra.mxu0 0.0
    %229 = vmatpush.msra.mxu0 0.0
    %230 = vmatpush.msra.mxu0 0.0
    %231 = vmatpush.msra.mxu0 0.0
    %232 = vmatpush.msra.mxu0 0.0
    %233 = vmatpush.msra.mxu0 0.0
    %234 = vmatpush.msra.mxu0 0.0
    %235 = vmatpush.msra.mxu0 0.0
    %236 = vmatpush.msra.mxu0 0.0
    %237 = vmatpush.msra.mxu0 0.0
    %238 = vmatpush.msra.mxu0 0.0
    %239 = vmatpush.msra.mxu0 0.0
    %240 = vmatpush.msra.mxu0 0.0
    %241 = vmatpush.msra.mxu0 0.0
    %242 = vmatpush.msra.mxu0 %v126
    %243 = vmatpush.msra.mxu0 %v125
    %244 = vmatmul.f32.gmra.mxu0 %v131
    %v245 = vpop.f32.mrf.mxu0
    %v246 = vadd.f32 0.0, %v245
    %247 = vmatmul.f32.gmra.mxu0 %v134
    %v248 = vpop.f32.mrf.mxu0
    %v249 = vadd.f32 0.0, %v248
    %250 = vdwg.mxu0
    %251 = vmatpush.msra.mxu0 0.0
    %252 = vmatpush.msra.mxu0 0.0
    %253 = vmatpush.msra.mxu0 0.0
    %254 = vmatpush.msra.mxu0 0.0
    %255 = vmatpush.msra.mxu0 0.0
    %256 = vmatpush.msra.mxu0 0.0
    %257 = vmatpush.msra.mxu0 0.0
    %258 = vmatpush.msra.mxu0 0.0
    %259 = vmatpush.msra.mxu0 0.0
    %260 = vmatpush.msra.mxu0 0.0
    %261 = vmatpush.msra.mxu0 0.0
    %262 = vmatpush.msra.mxu0 0.0
    %263 = vmatpush.msra.mxu0 0.0
    %264 = vmatpush.msra.mxu0 0.0
    %265 = vmatpush.msra.mxu0 %v128
    %266 = vmatpush.msra.mxu0 %v127
    %267 = vmatmul.f32.gmra.mxu0 %v131
    %v268 = vpop.f32.mrf.mxu0
    %v269 = vadd.f32 0.0, %v268
    %270 = vmatmul.f32.gmra.mxu0 %v134
    %v271 = vpop.f32.mrf.mxu0
    %v272 = vadd.f32 0.0, %v271
    %273 = vdwg.mxu0
    %274 = vmatpush.msra.mxu0 %v122
    %275 = vmatpush.msra.mxu0 %v121
    %276 = vmatpush.msra.mxu0 %v120
    %277 = vmatpush.msra.mxu0 %v119
    %278 = vmatpush.msra.mxu0 %v118
    %279 = vmatpush.msra.mxu0 %v117
    %280 = vmatpush.msra.mxu0 %v116
    %281 = vmatpush.msra.mxu0 %v115
    %282 = vmatpush.msra.mxu0 %v114
    %283 = vmatpush.msra.mxu0 %v113
    %284 = vmatpush.msra.mxu0 %v112
    %285 = vmatpush.msra.mxu0 %v111
    %286 = vmatpush.msra.mxu0 %v110
    %287 = vmatpush.msra.mxu0 %v109
    %288 = vmatpush.msra.mxu0 %v108
    %289 = vmatpush.msra.mxu0 %v107
    %290 = vmatmul.f32.gmra.mxu0 %v154
    %v291 = vpop.f32.mrf.mxu0
    %v292 = vadd.f32 0.0, %v291
    %293 = vmatmul.f32.gmra.mxu0 %v157
    %v294 = vpop.f32.mrf.mxu0
    %v295 = vadd.f32 0.0, %v294
    %296 = vmatmul.f32.gmra.mxu0 %v177
    %v297 = vpop.f32.mrf.mxu0
    %v298 = vadd.f32 0.0, %v297
    %299 = vmatmul.f32.gmra.mxu0 %v180
    %v300 = vpop.f32.mrf.mxu0
    %v301 = vadd.f32 0.0, %v300
    %302 = vmatmul.f32.gmra.mxu0 %v200
    %v303 = vpop.f32.mrf.mxu0
    %v304 = vadd.f32 0.0, %v303
    %305 = vmatmul.f32.gmra.mxu0 %v203
    %v306 = vpop.f32.mrf.mxu0
    %v307 = vadd.f32 0.0, %v306
    %308 = vmatmul.f32.gmra.mxu0 %v223
    %v309 = vpop.f32.mrf.mxu0
    %v310 = vadd.f32 0.0, %v309
    %311 = vmatmul.f32.gmra.mxu0 %v226
    %v312 = vpop.f32.mrf.mxu0
    %v313 = vadd.f32 0.0, %v312
    %314 = vmatmul.f32.gmra.mxu0 %v246
    %v315 = vpop.f32.mrf.mxu0
    %v316 = vadd.f32 0.0, %v315
    %317 = vmatmul.f32.gmra.mxu0 %v249
    %v318 = vpop.f32.mrf.mxu0
    %v319 = vadd.f32 0.0, %v318
    %320 = vmatmul.f32.gmra.mxu0 %v269
    %v321 = vpop.f32.mrf.mxu0
    %v322 = vadd.f32 0.0, %v321
    %323 = vmatmul.f32.gmra.mxu0 %v272
    %v324 = vpop.f32.mrf.mxu0
    %v325 = vadd.f32 0.0, %v324
    %326 = vdwg.mxu0
    %v327 = vadd.f32 %v292, 1e-10
    %v328 = vadd.f32 %v295, 1e-10
    %v329 = vrcp.pop %v327
    %v330 = vrcp.pop %v328
    %v331 = vmul.f32 %v327, %v329
    %v332 = vmul.f32 %v328, %v330
    %v333 = vsub.f32 2.0, %v331
    %v334 = vsub.f32 2.0, %v332
    %v335 = vmul.f32 %v329, %v333
    %v336 = vmul.f32 %v330, %v334
    %v337 = vmul.f32 %v298, %v335
    %v338 = vmul.f32 %v301, %v336
    %v339 = vmul.f32 %v304, %v335
    %v340 = vmul.f32 %v307, %v336
    %v341 = vmul.f32 %v337, %v339
    %v342 = vmul.f32 %v338, %v340
    %v343 = vmul.f32 %v341, 2.0
    %v344 = vmul.f32 %v342, 2.0
    %v345 = vadd.f32 %v343, 0.0001
    %v346 = vadd.f32 %v344, 0.0001
    %v347 = vmul.f32 %v322, %v335
    %v348 = vmul.f32 %v325, %v336
    %v349 = vsub.f32 %v347, %v341
    %v350 = vsub.f32 %v348, %v342
    %v351 = vmul.f32 %v349, 2.0
    %v352 = vmul.f32 %v350, 2.0
    %v353 = vadd.f32 %v351, 0.0009
    %v354 = vadd.f32 %v352, 0.0009
    %v355 = vmul.f32 %v345, %v353
    %v356 = vmul.f32 %v346, %v354
    %v357 = vmul.f32 %v337, %v337
    %v358 = vmul.f32 %v338, %v338
    %v359 = vmul.f32 %v339, %v339
    %v360 = vmul.f32 %v340, %v340
    %v361 = vadd.f32 %v357, %v359
    %v362 = vadd.f32 %v358, %v360
    %v363 = vadd.f32 %v361, 0.0001
    %v364 = vadd.f32 %v362, 0.0001
    %v365 = vadd.f32 %v310, %v316
    %v366 = vadd.f32 %v313, %v319
    %v367 = vmul.f32 %v365, %v335
    %v368 = vmul.f32 %v366, %v336
    %v369 = vsub.f32 %v367, %v361
    %v370 = vsub.f32 %v368, %v362
    %v371 = vadd.f32 %v369, 0.0009
    %v372 = vadd.f32 %v370, 0.0009
    %v373 = vmul.f32 %v363, %v371
    %v374 = vmul.f32 %v364, %v372
    %v375 = vrcp.pop %v373
    %v376 = vrcp.pop %v374
    %v377 = vmul.f32 %v373, %v375
    %v378 = vmul.f32 %v374, %v376
    %v379 = vsub.f32 2.0, %v377
    %v380 = vsub.f32 2.0, %v378
    %v381 = vmul.f32 %v375, %v379
    %v382 = vmul.f32 %v376, %v380
    %v383 = vmul.f32 %v355, %v381
    %v384 = vmul.f32 %v356, %v382
    %v385 = vadd.f32 %v383, %v384
    %v386 = vrot.slane %v385, 4
    %v387 = vadd.f32 %v385, %v386
    %v388 = vrot.slane %v387, 2
    %v389 = vadd.f32 %v387, %v388
    %v390 = vrot.slane %v389, 1
    %v391 = vadd.f32 %v389, %v390
    %392 = vst [vmem:[#allocation11] sm:$0xff] %v391
    // Predicated region
    $region42: #{tpu_custom_call.1} parent=1 // pred_check
      _
    $region43: #{tpu_custom_call.1} parent=1 // pred_check_branch
      %394 = sbr.rel (0) target = $region45
    $region44: #{tpu_custom_call.1} parent=1 // pred_region
      %396 = vsyncadd [#allocation4], 0
      %s398 = sshll.u32 [#allocation11], 4
      %s399 = int_to_ptr.vmem [resolvable:$true] %s398
      %s400 = sshll.u32 %s5, 4
      %s401 = int_to_ptr.hbm [resolvable:$true] %s400
      %403 = dma.vmem_to_hbm [thread:$0]  %s399, 128, %s401, [#allocation4]
    $region45: #{tpu_custom_call.1} parent=1 // pred_fallthru
      _
    // Predicated region
    $region46: #{tpu_custom_call.1} parent=1 // pred_check
      _
    $region47: #{tpu_custom_call.1} parent=1 // pred_check_branch
      %405 = sbr.rel (0) target = $region49
    $region48: #{tpu_custom_call.1} parent=1 // pred_region
      %407 = dma.done [#allocation4], 128
    $region49: #{tpu_custom_call.1} parent=1 // pred_fallthru
      _
    %408 = vsyncpa [#allocation3], 1
    %409 = vsyncpa [#allocation6], 1
    %410 = vsyncpa [#allocation9], 1
    %411 = vsyncpa [#allocation4], 1

// kernel: tpu_custom_call.1
$region0: #{tpu_custom_call.1}
  #allocation0 [shape = 'u32[]', space=smem, size = 0x4, offset = 0x4, fixed_abs, tag = 'smem constant byte address 0x4 - core index']
  #allocation1 [shape = 'u32[72,128]{1,0:T(1,128)}', space=vmem, size = 0x9000, scoped, tag = 'internal scratch']
  %s0 = inlined_call_operand.hbm [shape: f32[16,128], index: 0, kind: input, shape index: {}]
  %s1 = inlined_call_operand.hbm [shape: f32[16,128], index: 1, kind: input, shape index: {}]
  %s2 = inlined_call_operand.hbm [shape: f32[16,128], index: 2, kind: input, shape index: {}]
  %s3 = inlined_call_operand.hbm [shape: f32[16,16], index: 3, kind: input, shape index: {}]
  %s4 = inlined_call_operand.hbm [shape: f32[128,128], index: 4, kind: input, shape index: {}]
  %s5 = inlined_call_operand.hbm [shape: f32[1,8,128], index: 5, kind: output, shape index: {}]
  %s6 = sld [smem:[#allocation0]]
  $region50: #{tpu_custom_call.1} parent=0
    _
  %s8 = ssub.s32 1, %s6
  %s9 = scalar_select 0, %s8, %s6
  $region1: #{tpu_custom_call.1} parent=0
    #allocation2 [shape = 'u8[8192]{0}', space=vmem, size = 0x2000, scoped, tag = 'input window, operand 0, single buffered']
    #allocation3 [shape = 's32[1]{0}', space=sflag, size = 0x4, scoped, tag = 'scoped memory for tpu_custom_call.1']
    #allocation4 [shape = 's32[1]{0}', space=sflag, size = 0x4, scoped, tag = 'scoped memory for tpu_custom_call.1']
    #allocation5 [shape = 'u8[8192]{0}', space=vmem, size = 0x2000, scoped, tag = 'input window, operand 1, single buffered']
    #allocation6 [shape = 's32[1]{0}', space=sflag, size = 0x4, scoped, tag = 'scoped memory for tpu_custom_call.1']
    #allocation7 [shape = 'u8[8192]{0}', space=vmem, size = 0x2000, scoped, tag = 'input window, operand 2, single buffered']
    #allocation8 [shape = 'u8[8192]{0}', space=vmem, size = 0x2000, scoped, tag = 'input window, operand 3, single buffered']
    #allocation9 [shape = 's32[1]{0}', space=sflag, size = 0x4, scoped, tag = 'scoped memory for tpu_custom_call.1']
    #allocation10 [shape = 'u8[65536]{0}', space=vmem, size = 0x10000, scoped, tag = 'input window, operand 4, single buffered']
    #allocation11 [shape = 'u8[4096]{0}', space=vmem, size = 0x1000, scoped, tag = 'output window, operand 0, single buffered']
    %10 = vsyncpa [#allocation3], 0
    %11 = vsyncpa [#allocation6], 0
    %12 = vsyncpa [#allocation9], 0
    %13 = vsyncpa [#allocation4], 0
    // Predicated region
    $region2: #{tpu_custom_call.1} parent=1 // pred_check
      _
    $region3: #{tpu_custom_call.1} parent=1 // pred_check_branch
      %15 = sbr.rel (0) target = $region5
    $region4: #{tpu_custom_call.1} parent=1 // pred_region
      %17 = vsyncadd [#allocation3], 0
      %s18 = sshll.u32 %s0, 4
      %s19 = int_to_ptr.hbm [resolvable:$true] %s18
      %s20 = sshll.u32 [#allocation2], 4
      %s21 = int_to_ptr.vmem [resolvable:$true] %s20
      %26 = dma.hbm_to_vmem [thread:$0]  %s19, 256, %s21, [#allocation3], 128, 128, 8
    $region5: #{tpu_custom_call.1} parent=1 // pred_fallthru
      _
    // Predicated region
    $region6: #{tpu_custom_call.1} parent=1 // pred_check
      _
    $region7: #{tpu_custom_call.1} parent=1 // pred_check_branch
      %28 = sbr.rel (0) target = $region9
    $region8: #{tpu_custom_call.1} parent=1 // pred_region
      %30 = vsyncadd [#allocation6], 0
      %s31 = sshll.u32 %s1, 4
      %s32 = int_to_ptr.hbm [resolvable:$true] %s31
      %s33 = sshll.u32 [#allocation5], 4
      %s34 = int_to_ptr.vmem [resolvable:$true] %s33
      %39 = dma.hbm_to_vmem [thread:$0]  %s32, 256, %s34, [#allocation6], 128, 128, 8
    $region9: #{tpu_custom_call.1} parent=1 // pred_fallthru
      _
    // Predicated region
    $region10: #{tpu_custom_call.1} parent=1 // pred_check
      _
    $region11: #{tpu_custom_call.1} parent=1 // pred_check_branch
      %41 = sbr.rel (0) target = $region13
    $region12: #{tpu_custom_call.1} parent=1 // pred_region
      %43 = vsyncadd [#allocation6], 0
      %s44 = sshll.u32 %s2, 4
      %s45 = int_to_ptr.hbm [resolvable:$true] %s44
      %s46 = sshll.u32 [#allocation7], 4
      %s47 = int_to_ptr.vmem [resolvable:$true] %s46
      %52 = dma.hbm_to_vmem [thread:$0]  %s45, 256, %s47, [#allocation6], 128, 128, 8
    $region13: #{tpu_custom_call.1} parent=1 // pred_fallthru
      _
    // Predicated region
    $region14: #{tpu_custom_call.1} parent=1 // pred_check
      _
    $region15: #{tpu_custom_call.1} parent=1 // pred_check_branch
      %54 = sbr.rel (0) target = $region17
    $region16: #{tpu_custom_call.1} parent=1 // pred_region
      %56 = vsyncadd [#allocation9], 0
      %s57 = sshll.u32 %s3, 4
      %s58 = int_to_ptr.hbm [resolvable:$true] %s57
      %s59 = sshll.u32 [#allocation8], 4
      %s60 = int_to_ptr.vmem [resolvable:$true] %s59
      %65 = dma.hbm_to_vmem [thread:$0]  %s58, 256, %s60, [#allocation9], 128, 128, 8
    $region17: #{tpu_custom_call.1} parent=1 // pred_fallthru
      _
    // Predicated region
    $region18: #{tpu_custom_call.1} parent=1 // pred_check
      _
    $region19: #{tpu_custom_call.1} parent=1 // pred_check_branch
      %67 = sbr.rel (0) target = $region21
    $region20: #{tpu_custom_call.1} parent=1 // pred_region
      %69 = vsyncadd [#allocation9], 0
      %s70 = sshll.u32 %s4, 4
      %s71 = int_to_ptr.hbm [resolvable:$true] %s70
      %s72 = sshll.u32 [#allocation10], 4
      %s73 = int_to_ptr.vmem [resolvable:$true] %s72
      %78 = dma.hbm_to_vmem [thread:$0]  %s71, 2048, %s73, [#allocation9], 128, 128, 8
    $region21: #{tpu_custom_call.1} parent=1 // pred_fallthru
      _
    // Predicated region
    $region22: #{tpu_custom_call.1} parent=1 // pred_check
      _
    $region23: #{tpu_custom_call.1} parent=1 // pred_check_branch
      %80 = sbr.rel (0) target = $region25
    $region24: #{tpu_custom_call.1} parent=1 // pred_region
      %82 = dma.done [#allocation3], 256
    $region25: #{tpu_custom_call.1} parent=1 // pred_fallthru
      _
    // Predicated region
    $region26: #{tpu_custom_call.1} parent=1 // pred_check
      _
    $region27: #{tpu_custom_call.1} parent=1 // pred_check_branch
      %84 = sbr.rel (0) target = $region29
    $region28: #{tpu_custom_call.1} parent=1 // pred_region
      %86 = dma.done [#allocation6], 256
    $region29: #{tpu_custom_call.1} parent=1 // pred_fallthru
      _
    // Predicated region
    $region30: #{tpu_custom_call.1} parent=1 // pred_check
      _
    $region31: #{tpu_custom_call.1} parent=1 // pred_check_branch
      %88 = sbr.rel (0) target = $region33
    $region32: #{tpu_custom_call.1} parent=1 // pred_region
      %90 = dma.done [#allocation6], 256
    $region33: #{tpu_custom_call.1} parent=1 // pred_fallthru
      _
    // Predicated region
    $region34: #{tpu_custom_call.1} parent=1 // pred_check
      _
    $region35: #{tpu_custom_call.1} parent=1 // pred_check_branch
      %92 = sbr.rel (0) target = $region37
    $region36: #{tpu_custom_call.1} parent=1 // pred_region
      %94 = dma.done [#allocation9], 256
    $region37: #{tpu_custom_call.1} parent=1 // pred_fallthru
      _
    // Predicated region
    $region38: #{tpu_custom_call.1} parent=1 // pred_check
      _
    $region39: #{tpu_custom_call.1} parent=1 // pred_check_branch
      %96 = sbr.rel (0) target = $region41
    $region40: #{tpu_custom_call.1} parent=1 // pred_region
      %98 = dma.done [#allocation9], 2048
    $region41: #{tpu_custom_call.1} parent=1 // pred_fallthru
      _
    %v99 = vld [vmem:[#allocation2] sm:$0xff]
    %v100 = vld [vmem:[#allocation2 + $0x8] sm:$0xff]
    %v101 = vld [vmem:[#allocation5] sm:$0xff]
    %v102 = vld [vmem:[#allocation5 + $0x8] sm:$0xff]
    %v103 = vld [vmem:[#allocation7] sm:$0xff]
    %v104 = vld [vmem:[#allocation7 + $0x8] sm:$0xff]
    %v105 = vld [vmem:[#allocation8] sm:$0xff]
    %v106 = vld [vmem:[#allocation8 + $0x8] sm:$0xff]
    %v107 = vld [vmem:[#allocation10] sm:$0xff]
    %v108 = vld [vmem:[#allocation10 + $0x8] sm:$0xff]
    %v109 = vld [vmem:[#allocation10 + $0x10] sm:$0xff]
    %v110 = vld [vmem:[#allocation10 + $0x18] sm:$0xff]
    %v111 = vld [vmem:[#allocation10 + $0x20] sm:$0xff]
    %v112 = vld [vmem:[#allocation10 + $0x28] sm:$0xff]
    %v113 = vld [vmem:[#allocation10 + $0x30] sm:$0xff]
    %v114 = vld [vmem:[#allocation10 + $0x38] sm:$0xff]
    %v115 = vld [vmem:[#allocation10 + $0x40] sm:$0xff]
    %v116 = vld [vmem:[#allocation10 + $0x48] sm:$0xff]
    %v117 = vld [vmem:[#allocation10 + $0x50] sm:$0xff]
    %v118 = vld [vmem:[#allocation10 + $0x58] sm:$0xff]
    %v119 = vld [vmem:[#allocation10 + $0x60] sm:$0xff]
    %v120 = vld [vmem:[#allocation10 + $0x68] sm:$0xff]
    %v121 = vld [vmem:[#allocation10 + $0x70] sm:$0xff]
    %v122 = vld [vmem:[#allocation10 + $0x78] sm:$0xff]
    %v123 = vmul.f32 %v99, %v99
    %v124 = vmul.f32 %v100, %v100
    %v125 = vmul.f32 %v101, %v101
    %v126 = vmul.f32 %v102, %v102
    %v127 = vmul.f32 %v99, %v101
    %v128 = vmul.f32 %v100, %v102
    %vm129 = vcmask 130048
    %v131 = vsel %vm129, %v105, 0
    %v134 = vsel %vm129, %v106, 0
    %136 = vmatpush.msra.mxu0 0.0
    %137 = vmatpush.msra.mxu0 0.0
    %138 = vmatpush.msra.mxu0 0.0
    %139 = vmatpush.msra.mxu0 0.0
    %140 = vmatpush.msra.mxu0 0.0
    %141 = vmatpush.msra.mxu0 0.0
    %142 = vmatpush.msra.mxu0 0.0
    %143 = vmatpush.msra.mxu0 0.0
    %144 = vmatpush.msra.mxu0 0.0
    %145 = vmatpush.msra.mxu0 0.0
    %146 = vmatpush.msra.mxu0 0.0
    %147 = vmatpush.msra.mxu0 0.0
    %148 = vmatpush.msra.mxu0 0.0
    %149 = vmatpush.msra.mxu0 0.0
    %150 = vmatpush.msra.mxu0 %v104
    %151 = vmatpush.msra.mxu0 %v103
    %152 = vmatmul.f32.gmra.mxu0 %v131
    %v153 = vpop.f32.mrf.mxu0
    %v154 = vadd.f32 0.0, %v153
    %155 = vmatmul.f32.gmra.mxu0 %v134
    %v156 = vpop.f32.mrf.mxu0
    %v157 = vadd.f32 0.0, %v156
    %158 = vdwg.mxu0
    %159 = vmatpush.msra.mxu0 0.0
    %160 = vmatpush.msra.mxu0 0.0
    %161 = vmatpush.msra.mxu0 0.0
    %162 = vmatpush.msra.mxu0 0.0
    %163 = vmatpush.msra.mxu0 0.0
    %164 = vmatpush.msra.mxu0 0.0
    %165 = vmatpush.msra.mxu0 0.0
    %166 = vmatpush.msra.mxu0 0.0
    %167 = vmatpush.msra.mxu0 0.0
    %168 = vmatpush.msra.mxu0 0.0
    %169 = vmatpush.msra.mxu0 0.0
    %170 = vmatpush.msra.mxu0 0.0
    %171 = vmatpush.msra.mxu0 0.0
    %172 = vmatpush.msra.mxu0 0.0
    %173 = vmatpush.msra.mxu0 %v100
    %174 = vmatpush.msra.mxu0 %v99
    %175 = vmatmul.f32.gmra.mxu0 %v131
    %v176 = vpop.f32.mrf.mxu0
    %v177 = vadd.f32 0.0, %v176
    %178 = vmatmul.f32.gmra.mxu0 %v134
    %v179 = vpop.f32.mrf.mxu0
    %v180 = vadd.f32 0.0, %v179
    %181 = vdwg.mxu0
    %182 = vmatpush.msra.mxu0 0.0
    %183 = vmatpush.msra.mxu0 0.0
    %184 = vmatpush.msra.mxu0 0.0
    %185 = vmatpush.msra.mxu0 0.0
    %186 = vmatpush.msra.mxu0 0.0
    %187 = vmatpush.msra.mxu0 0.0
    %188 = vmatpush.msra.mxu0 0.0
    %189 = vmatpush.msra.mxu0 0.0
    %190 = vmatpush.msra.mxu0 0.0
    %191 = vmatpush.msra.mxu0 0.0
    %192 = vmatpush.msra.mxu0 0.0
    %193 = vmatpush.msra.mxu0 0.0
    %194 = vmatpush.msra.mxu0 0.0
    %195 = vmatpush.msra.mxu0 0.0
    %196 = vmatpush.msra.mxu0 %v102
    %197 = vmatpush.msra.mxu0 %v101
    %198 = vmatmul.f32.gmra.mxu0 %v131
    %v199 = vpop.f32.mrf.mxu0
    %v200 = vadd.f32 0.0, %v199
    %201 = vmatmul.f32.gmra.mxu0 %v134
    %v202 = vpop.f32.mrf.mxu0
    %v203 = vadd.f32 0.0, %v202
    %204 = vdwg.mxu0
    %205 = vmatpush.msra.mxu0 0.0
    %206 = vmatpush.msra.mxu0 0.0
    %207 = vmatpush.msra.mxu0 0.0
    %208 = vmatpush.msra.mxu0 0.0
    %209 = vmatpush.msra.mxu0 0.0
    %210 = vmatpush.msra.mxu0 0.0
    %211 = vmatpush.msra.mxu0 0.0
    %212 = vmatpush.msra.mxu0 0.0
    %213 = vmatpush.msra.mxu0 0.0
    %214 = vmatpush.msra.mxu0 0.0
    %215 = vmatpush.msra.mxu0 0.0
    %216 = vmatpush.msra.mxu0 0.0
    %217 = vmatpush.msra.mxu0 0.0
    %218 = vmatpush.msra.mxu0 0.0
    %219 = vmatpush.msra.mxu0 %v124
    %220 = vmatpush.msra.mxu0 %v123
    %221 = vmatmul.f32.gmra.mxu0 %v131
    %v222 = vpop.f32.mrf.mxu0
    %v223 = vadd.f32 0.0, %v222
    %224 = vmatmul.f32.gmra.mxu0 %v134
    %v225 = vpop.f32.mrf.mxu0
    %v226 = vadd.f32 0.0, %v225
    %227 = vdwg.mxu0
    %228 = vmatpush.msra.mxu0 0.0
    %229 = vmatpush.msra.mxu0 0.0
    %230 = vmatpush.msra.mxu0 0.0
    %231 = vmatpush.msra.mxu0 0.0
    %232 = vmatpush.msra.mxu0 0.0
    %233 = vmatpush.msra.mxu0 0.0
    %234 = vmatpush.msra.mxu0 0.0
    %235 = vmatpush.msra.mxu0 0.0
    %236 = vmatpush.msra.mxu0 0.0
    %237 = vmatpush.msra.mxu0 0.0
    %238 = vmatpush.msra.mxu0 0.0
    %239 = vmatpush.msra.mxu0 0.0
    %240 = vmatpush.msra.mxu0 0.0
    %241 = vmatpush.msra.mxu0 0.0
    %242 = vmatpush.msra.mxu0 %v126
    %243 = vmatpush.msra.mxu0 %v125
    %244 = vmatmul.f32.gmra.mxu0 %v131
    %v245 = vpop.f32.mrf.mxu0
    %v246 = vadd.f32 0.0, %v245
    %247 = vmatmul.f32.gmra.mxu0 %v134
    %v248 = vpop.f32.mrf.mxu0
    %v249 = vadd.f32 0.0, %v248
    %250 = vdwg.mxu0
    %251 = vmatpush.msra.mxu0 0.0
    %252 = vmatpush.msra.mxu0 0.0
    %253 = vmatpush.msra.mxu0 0.0
    %254 = vmatpush.msra.mxu0 0.0
    %255 = vmatpush.msra.mxu0 0.0
    %256 = vmatpush.msra.mxu0 0.0
    %257 = vmatpush.msra.mxu0 0.0
    %258 = vmatpush.msra.mxu0 0.0
    %259 = vmatpush.msra.mxu0 0.0
    %260 = vmatpush.msra.mxu0 0.0
    %261 = vmatpush.msra.mxu0 0.0
    %262 = vmatpush.msra.mxu0 0.0
    %263 = vmatpush.msra.mxu0 0.0
    %264 = vmatpush.msra.mxu0 0.0
    %265 = vmatpush.msra.mxu0 %v128
    %266 = vmatpush.msra.mxu0 %v127
    %267 = vmatmul.f32.gmra.mxu0 %v131
    %v268 = vpop.f32.mrf.mxu0
    %v269 = vadd.f32 0.0, %v268
    %270 = vmatmul.f32.gmra.mxu0 %v134
    %v271 = vpop.f32.mrf.mxu0
    %v272 = vadd.f32 0.0, %v271
    %273 = vdwg.mxu0
    %274 = vmatpush.msra.mxu0 %v122
    %275 = vmatpush.msra.mxu0 %v121
    %276 = vmatpush.msra.mxu0 %v120
    %277 = vmatpush.msra.mxu0 %v119
    %278 = vmatpush.msra.mxu0 %v118
    %279 = vmatpush.msra.mxu0 %v117
    %280 = vmatpush.msra.mxu0 %v116
    %281 = vmatpush.msra.mxu0 %v115
    %282 = vmatpush.msra.mxu0 %v114
    %283 = vmatpush.msra.mxu0 %v113
    %284 = vmatpush.msra.mxu0 %v112
    %285 = vmatpush.msra.mxu0 %v111
    %286 = vmatpush.msra.mxu0 %v110
    %287 = vmatpush.msra.mxu0 %v109
    %288 = vmatpush.msra.mxu0 %v108
    %289 = vmatpush.msra.mxu0 %v107
    %290 = vmatmul.f32.gmra.mxu0 %v154
    %v291 = vpop.f32.mrf.mxu0
    %v292 = vadd.f32 0.0, %v291
    %293 = vmatmul.f32.gmra.mxu0 %v157
    %v294 = vpop.f32.mrf.mxu0
    %v295 = vadd.f32 0.0, %v294
    %296 = vmatmul.f32.gmra.mxu0 %v177
    %v297 = vpop.f32.mrf.mxu0
    %v298 = vadd.f32 0.0, %v297
    %299 = vmatmul.f32.gmra.mxu0 %v180
    %v300 = vpop.f32.mrf.mxu0
    %v301 = vadd.f32 0.0, %v300
    %302 = vmatmul.f32.gmra.mxu0 %v200
    %v303 = vpop.f32.mrf.mxu0
    %v304 = vadd.f32 0.0, %v303
    %305 = vmatmul.f32.gmra.mxu0 %v203
    %v306 = vpop.f32.mrf.mxu0
    %v307 = vadd.f32 0.0, %v306
    %308 = vmatmul.f32.gmra.mxu0 %v223
    %v309 = vpop.f32.mrf.mxu0
    %v310 = vadd.f32 0.0, %v309
    %311 = vmatmul.f32.gmra.mxu0 %v226
    %v312 = vpop.f32.mrf.mxu0
    %v313 = vadd.f32 0.0, %v312
    %314 = vmatmul.f32.gmra.mxu0 %v246
    %v315 = vpop.f32.mrf.mxu0
    %v316 = vadd.f32 0.0, %v315
    %317 = vmatmul.f32.gmra.mxu0 %v249
    %v318 = vpop.f32.mrf.mxu0
    %v319 = vadd.f32 0.0, %v318
    %320 = vmatmul.f32.gmra.mxu0 %v269
    %v321 = vpop.f32.mrf.mxu0
    %v322 = vadd.f32 0.0, %v321
    %323 = vmatmul.f32.gmra.mxu0 %v272
    %v324 = vpop.f32.mrf.mxu0
    %v325 = vadd.f32 0.0, %v324
    %326 = vdwg.mxu0
    %v327 = vadd.f32 %v292, 1e-10
    %v328 = vadd.f32 %v295, 1e-10
    %v329 = vrcp.pop %v327
    %v330 = vrcp.pop %v328
    %v331 = vmul.f32 %v327, %v329
    %v332 = vmul.f32 %v328, %v330
    %v333 = vsub.f32 2.0, %v331
    %v334 = vsub.f32 2.0, %v332
    %v335 = vmul.f32 %v329, %v333
    %v336 = vmul.f32 %v330, %v334
    %v337 = vmul.f32 %v298, %v335
    %v338 = vmul.f32 %v301, %v336
    %v339 = vmul.f32 %v304, %v335
    %v340 = vmul.f32 %v307, %v336
    %v341 = vmul.f32 %v337, %v339
    %v342 = vmul.f32 %v338, %v340
    %v343 = vmul.f32 %v341, 2.0
    %v344 = vmul.f32 %v342, 2.0
    %v345 = vadd.f32 %v343, 0.0001
    %v346 = vadd.f32 %v344, 0.0001
    %v347 = vmul.f32 %v322, %v335
    %v348 = vmul.f32 %v325, %v336
    %v349 = vsub.f32 %v347, %v341
    %v350 = vsub.f32 %v348, %v342
    %v351 = vmul.f32 %v349, 2.0
    %v352 = vmul.f32 %v350, 2.0
    %v353 = vadd.f32 %v351, 0.0009
    %v354 = vadd.f32 %v352, 0.0009
    %v355 = vmul.f32 %v345, %v353
    %v356 = vmul.f32 %v346, %v354
    %v357 = vmul.f32 %v337, %v337
    %v358 = vmul.f32 %v338, %v338
    %v359 = vmul.f32 %v339, %v339
    %v360 = vmul.f32 %v340, %v340
    %v361 = vadd.f32 %v357, %v359
    %v362 = vadd.f32 %v358, %v360
    %v363 = vadd.f32 %v361, 0.0001
    %v364 = vadd.f32 %v362, 0.0001
    %v365 = vadd.f32 %v310, %v316
    %v366 = vadd.f32 %v313, %v319
    %v367 = vmul.f32 %v365, %v335
    %v368 = vmul.f32 %v366, %v336
    %v369 = vsub.f32 %v367, %v361
    %v370 = vsub.f32 %v368, %v362
    %v371 = vadd.f32 %v369, 0.0009
    %v372 = vadd.f32 %v370, 0.0009
    %v373 = vmul.f32 %v363, %v371
    %v374 = vmul.f32 %v364, %v372
    %v375 = vrcp.pop %v373
    %v376 = vrcp.pop %v374
    %v377 = vmul.f32 %v373, %v375
    %v378 = vmul.f32 %v374, %v376
    %v379 = vsub.f32 2.0, %v377
    %v380 = vsub.f32 2.0, %v378
    %v381 = vmul.f32 %v375, %v379
    %v382 = vmul.f32 %v376, %v380
    %v383 = vmul.f32 %v355, %v381
    %v384 = vmul.f32 %v356, %v382
    %v385 = vadd.f32 %v383, %v384
    %v386 = vrot.slane %v385, 4
    %v387 = vadd.f32 %v385, %v386
    %v388 = vrot.slane %v387, 2
    %v389 = vadd.f32 %v387, %v388
    %v390 = vrot.slane %v389, 1
    %v391 = vadd.f32 %v389, %v390
    %392 = vst [vmem:[#allocation11] sm:$0xff] %v391
    // Predicated region
    $region42: #{tpu_custom_call.1} parent=1 // pred_check
      _
    $region43: #{tpu_custom_call.1} parent=1 // pred_check_branch
      %394 = sbr.rel (0) target = $region45
    $region44: #{tpu_custom_call.1} parent=1 // pred_region
      %396 = vsyncadd [#allocation4], 0
      %s398 = sshll.u32 [#allocation11], 4
      %s399 = int_to_ptr.vmem [resolvable:$true] %s398
      %s400 = sshll.u32 %s5, 4
      %s401 = int_to_ptr.hbm [resolvable:$true] %s400
      %403 = dma.vmem_to_hbm [thread:$0]  %s399, 128, %s401, [#allocation4]
    $region45: #{tpu_custom_call.1} parent=1 // pred_fallthru
      _
    // Predicated region
    $region46: #{tpu_custom_call.1} parent=1 // pred_check
      _
    $region47: #{tpu_custom_call.1} parent=1 // pred_check_branch
      %405 = sbr.rel (0) target = $region49
    $region48: #{tpu_custom_call.1} parent=1 // pred_region
      %407 = dma.done [#allocation4], 128
    $region49: #{tpu_custom_call.1} parent=1 // pred_fallthru
      _
    %408 = vsyncpa [#allocation3], 1
    %409 = vsyncpa [#allocation6], 1
    %410 = vsyncpa [#allocation9], 1
    %411 = vsyncpa [#allocation4], 1

</llo_original>
